<compile_context>
chip_gen: v5e
topology: v5e:2x2
jax: 0.10.0
libtpu: 0.0.40
codegen_flags: <defaults>
</compile_context>

<pallas_src>
import functools

import numpy as np

import jax
import jax.numpy as jnp
from jax import lax
from jax.experimental import pallas as pl
from jax.experimental.pallas import tpu as pltpu


def _round_up(x, m):
    return ((x + m - 1) // m) * m


def _normalize_f32(x):
    """F.normalize(x, dim=-1): x / max(||x||_2, 1e-12), computed in f32.

    max(sqrt(ss), eps) == sqrt(max(ss, eps**2)), so a single guarded rsqrt
    replaces sqrt + divide.
    """
    x = x.astype(jnp.float32)
    ss = jnp.sum(x * x, axis=-1, keepdims=True)
    inv = lax.rsqrt(jnp.maximum(ss, jnp.float32(1e-24)))
    return x * inv


def _tree_sum(parts):
    """Balanced pairwise sum of equal-shaped arrays (short dep chain)."""
    parts = list(parts)
    while len(parts) > 1:
        nxt = [parts[k] + parts[k + 1] for k in range(0, len(parts) - 1, 2)]
        if len(parts) % 2:
            nxt.append(parts[-1])
        parts = nxt
    return parts[0]


def _vmem_budget_bytes():
    """Generation-aware VMEM limit: physical minus headroom, capped at 100 MiB.

    v7x (64 MiB physical) -> 48 MiB; v5e/v6e (128 MiB) -> 100 MiB.
    Falls back to the conservative v7x value if the query is unavailable.
    """
    try:
        phys = int(pltpu.get_tpu_info().vmem_capacity_bytes)
    except Exception:
        phys = 64 << 20
    return max(min(phys - (16 << 20), 100 << 20), 32 << 20)


def _pick_tile(N, D, itemsize, vmem_budget):
    """Largest square tile (symmetry needs square) that fits VMEM & N."""
    n128 = _round_up(max(N, 1), 128)
    if n128 >= 1024:
        cands = (512, 256, 128)
    elif n128 >= 256:
        cands = (256, 128)
    else:
        cands = (128,)
    for tile in cands:
        in_bytes = 4 * 2 * tile * D * itemsize          # 4 double-buffered blocks
        sim_bytes = 3 * tile * tile * 4                  # sim_s, sim_t, live temps
        if in_bytes + sim_bytes + (4 << 20) <= vmem_budget:
            return tile
    return 128


def _gss_kernel(i_idx_ref, j_idx_ref,
                s_row_ref, t_row_ref, s_col_ref, t_col_ref,
                o_ref, *, tile):
    t = pl.program_id(1)
    i = i_idx_ref[t]
    j = j_idx_ref[t]

    # A @ B^T directly on the MXU: contract dim 1 of both operands.
    dn = (((1,), (1,)), ((), ()))
    sim_s = lax.dot_general(s_row_ref[...], s_col_ref[...], dn,
                            preferred_element_type=jnp.float32)
    sim_t = lax.dot_general(t_row_ref[...], t_col_ref[...], dn,
                            preferred_element_type=jnp.float32)

    # Fused epilogue: per 8-row strip, (a-b)^2 folded into 4 independent
    # (8, tile) accumulator chains; no full-tile diff / d2 slabs materialized.
    n_strips = tile // 8
    n_chains = min(4, n_strips)
    chains = []
    for c in range(n_chains):
        acc = None
        for r in range(c, n_strips, n_chains):
            lo = r * 8
            d = sim_s[lo:lo + 8, :] - sim_t[lo:lo + 8, :]
            acc = d * d if acc is None else acc + d * d
        chains.append(acc)
    p8 = _tree_sum(chains)                                   # (8, tile)

    # Lane reduction to a lane-dense (8, 128) partial (vreg-aligned slices).
    lanes = [p8[:, c * 128:(c + 1) * 128] for c in range(tile // 128)]
    part = _tree_sum(lanes)                                  # (8, 128)

    # Off-diagonal tiles count twice (Gram matrices are symmetric).
    scale = jnp.where(i == j, jnp.float32(1.0), jnp.float32(2.0))
    o_ref[...] = part * scale


def global_structure_sim_loss(student_patch_feat, teacher_patch_feat, *,
                              matmul_dtype=None, tile=None):
    """student_patch_feat, teacher_patch_feat: (B, N, D) -> scalar MSE loss."""
    s, t = student_patch_feat, teacher_patch_feat
    B, N, D = s.shape
    assert t.shape == (B, N, D)

    if matmul_dtype is None:
        # bf16 inputs -> full-rate bf16 MXU (and half the DMA bytes);
        # f32 inputs keep f32 matmul semantics vs the f32 reference.
        matmul_dtype = jnp.bfloat16 if s.dtype == jnp.bfloat16 else jnp.float32
    mm_dtype = jnp.dtype(matmul_dtype)

    vmem_limit = _vmem_budget_bytes()
    if tile is None:
        tile = _pick_tile(N, D, mm_dtype.itemsize, vmem_limit - (8 << 20))

    # Hoisted normalization (one fused XLA op) + cast to the MXU dtype.
    s_n = _normalize_f32(s).astype(mm_dtype)
    t_n = _normalize_f32(t).astype(mm_dtype)

    # Pad the patch axis to a tile multiple.  Zero rows normalize to zero
    # vectors -> padded similarity entries are exactly 0 for both student and
    # teacher and contribute nothing to the sum.
    n_pad = _round_up(N, tile)
    if n_pad != N:
        pad = ((0, 0), (0, n_pad - N), (0, 0))
        s_n = jnp.pad(s_n, pad)
        t_n = jnp.pad(t_n, pad)

    g = n_pad // tile
    ii, jj = np.triu_indices(g)                   # row-major upper triangle:
    i_idx = jnp.asarray(ii, dtype=jnp.int32)      #   row block constant across
    j_idx = jnp.asarray(jj, dtype=jnp.int32)      #   consecutive steps -> reuse
    n_steps = int(ii.size)                        # g*(g+1)//2

    row_spec = pl.BlockSpec((pl.Squeezed(), tile, D),
                            lambda b, k, i_r, j_r: (b, i_r[k], 0))
    col_spec = pl.BlockSpec((pl.Squeezed(), tile, D),
                            lambda b, k, i_r, j_r: (b, j_r[k], 0))
    out_spec = pl.BlockSpec((pl.Squeezed(), pl.Squeezed(), 8, 128),
                            lambda b, k, i_r, j_r: (b, k, 0, 0))

    kernel = functools.partial(_gss_kernel, tile=tile)

    partials = pl.pallas_call(
        kernel,
        out_shape=jax.ShapeDtypeStruct((B, n_steps, 8, 128), jnp.float32),
        grid_spec=pltpu.PrefetchScalarGridSpec(
            num_scalar_prefetch=2,
            grid=(B, n_steps),
            in_specs=[row_spec, row_spec, col_spec, col_spec],
            out_specs=out_spec,
        ),
        compiler_params=pltpu.CompilerParams(
            # Each (b, t) step writes a distinct output block -> both axes are
            # parallel (megacore-shardable on v7x even when B == 1).
            dimension_semantics=("parallel", "parallel"),
            vmem_limit_bytes=int(vmem_limit),
        ),
    )(i_idx, j_idx, s_n, t_n, s_n, t_n)

    # F.mse_loss default (mean) reduction over the TRUE B*N*N elements.
    return jnp.sum(partials) / jnp.float32(B * N * N)


def _reference_loss(s, t):
    eps = 1e-12
    sn = s / jnp.maximum(jnp.linalg.norm(s, axis=-1, keepdims=True), eps)
    tn = t / jnp.maximum(jnp.linalg.norm(t, axis=-1, keepdims=True), eps)
    hp = jax.lax.Precision.HIGHEST
    sim_s = jnp.einsum("bnd,bmd->bnm", sn, sn, precision=hp)
    sim_t = jnp.einsum("bnd,bmd->bnm", tn, tn, precision=hp)
    return jnp.mean((sim_s - sim_t) ** 2)


if __name__ == "__main__":
    # 1) Small single-tile case (B, N, D) patch features.
    B, N, D = 2, 8, 32
    k_s, k_t = jax.random.split(jax.random.PRNGKey(0))
    student = jax.random.normal(k_s, (B, N, D), dtype=jnp.float32)
    teacher = jax.random.normal(k_t, (B, N, D), dtype=jnp.float32)
    loss = jax.block_until_ready(global_structure_sim_loss(student, teacher))
    ref = jax.block_until_ready(_reference_loss(student, teacher))
    assert jnp.allclose(loss, ref, rtol=1e-4, atol=1e-6), (loss, ref)

    # 2) Padded multi-tile case: exercises the upper-triangular enumeration,
    #    off-diagonal x2 scaling and per-(b, t) partial writeback.
    B2, N2, D2 = 2, 272, 96
    k_s2, k_t2 = jax.random.split(jax.random.PRNGKey(1))
    student2 = jax.random.normal(k_s2, (B2, N2, D2), dtype=jnp.float32)
    teacher2 = jax.random.normal(k_t2, (B2, N2, D2), dtype=jnp.float32)
    loss2 = jax.block_until_ready(global_structure_sim_loss(student2, teacher2))
    ref2 = jax.block_until_ready(_reference_loss(student2, teacher2))
    assert jnp.allclose(loss2, ref2, rtol=1e-4, atol=1e-6), (loss2, ref2)

    # 3) Forced small tile: g = 3 row/col blocks, 6 triangular steps, B = 1.
    B3, N3, D3 = 1, 300, 64
    k_s3, k_t3 = jax.random.split(jax.random.PRNGKey(2))
    student3 = jax.random.normal(k_s3, (B3, N3, D3), dtype=jnp.float32)
    teacher3 = jax.random.normal(k_t3, (B3, N3, D3), dtype=jnp.float32)
    loss3 = jax.block_until_ready(
        global_structure_sim_loss(student3, teacher3, tile=128))
    ref3 = jax.block_until_ready(_reference_loss(student3, teacher3))
    assert jnp.allclose(loss3, ref3, rtol=1e-4, atol=1e-6), (loss3, ref3)

    print("KERNEL_OK")
</pallas_src>

<mosaic_0001>
module attributes {stable_mosaic.version = 11 : i64} {
  func.func @_gss_kernel(%arg0: i32, %arg1: i32, %arg2: memref<1xi32, #tpu.memory_space<smem>>, %arg3: memref<1xi32, #tpu.memory_space<smem>>, %arg4: memref<1x128x32xf32, #tpu.memory_space<vmem>>, %arg5: memref<1x128x32xf32, #tpu.memory_space<vmem>>, %arg6: memref<1x128x32xf32, #tpu.memory_space<vmem>>, %arg7: memref<1x128x32xf32, #tpu.memory_space<vmem>>, %arg8: memref<1x1x8x128xf32, #tpu.memory_space<vmem>>) attributes {dimension_semantics = [#tpu.dimension_semantics<parallel>, #tpu.dimension_semantics<parallel>], iteration_bounds = array<i64: 2, 1>, scalar_prefetch = 2 : i64, scratch_operands = 0 : i64, tpu.core_type = #tpu.core_type<tc>, window_params = [{transform_indices = @transform_0, window_bounds = array<i64: 1, 128, 32>}, {transform_indices = @transform_1, window_bounds = array<i64: 1, 128, 32>}, {transform_indices = @transform_2, window_bounds = array<i64: 1, 128, 32>}, {transform_indices = @transform_3, window_bounds = array<i64: 1, 128, 32>}, {transform_indices = @transform_4, window_bounds = array<i64: 1, 1, 8, 128>}]} {
    %0 = arith.index_cast %arg1 : i32 to index
    %1 = memref.load %arg2[%0] : memref<1xi32, #tpu.memory_space<smem>>
    %2 = arith.index_cast %arg1 : i32 to index
    %3 = memref.load %arg3[%2] : memref<1xi32, #tpu.memory_space<smem>>
    %c0 = arith.constant 0 : index
    %c0_0 = arith.constant 0 : index
    %c0_1 = arith.constant 0 : index
    %4 = vector.load %arg4[%c0, %c0_0, %c0_1] : memref<1x128x32xf32, #tpu.memory_space<vmem>>, vector<1x128x32xf32>
    %5 = vector.shape_cast %4 : vector<1x128x32xf32> to vector<128x32xf32>
    %c0_2 = arith.constant 0 : index
    %c0_3 = arith.constant 0 : index
    %c0_4 = arith.constant 0 : index
    %6 = vector.load %arg6[%c0_2, %c0_3, %c0_4] : memref<1x128x32xf32, #tpu.memory_space<vmem>>, vector<1x128x32xf32>
    %7 = vector.shape_cast %6 : vector<1x128x32xf32> to vector<128x32xf32>
    %cst = arith.constant dense<0.000000e+00> : vector<128x128xf32>
    %8 = tpu.matmul %5, %7, %cst {dimension_numbers = #tpu.dot_dimension_numbers<[1], [1], [0], [0], [0, 0, 1, 0], [], []>} : vector<128x32xf32>, vector<128x32xf32>, vector<128x128xf32> -> vector<128x128xf32>
    %c0_5 = arith.constant 0 : index
    %c0_6 = arith.constant 0 : index
    %c0_7 = arith.constant 0 : index
    %9 = vector.load %arg5[%c0_5, %c0_6, %c0_7] : memref<1x128x32xf32, #tpu.memory_space<vmem>>, vector<1x128x32xf32>
    %10 = vector.shape_cast %9 : vector<1x128x32xf32> to vector<128x32xf32>
    %c0_8 = arith.constant 0 : index
    %c0_9 = arith.constant 0 : index
    %c0_10 = arith.constant 0 : index
    %11 = vector.load %arg7[%c0_8, %c0_9, %c0_10] : memref<1x128x32xf32, #tpu.memory_space<vmem>>, vector<1x128x32xf32>
    %12 = vector.shape_cast %11 : vector<1x128x32xf32> to vector<128x32xf32>
    %cst_11 = arith.constant dense<0.000000e+00> : vector<128x128xf32>
    %13 = tpu.matmul %10, %12, %cst_11 {dimension_numbers = #tpu.dot_dimension_numbers<[1], [1], [0], [0], [0, 0, 1, 0], [], []>} : vector<128x32xf32>, vector<128x32xf32>, vector<128x128xf32> -> vector<128x128xf32>
    %14 = vector.extract_strided_slice %8 {offsets = [0, 0], sizes = [8, 128], strides = [1, 1]} : vector<128x128xf32> to vector<8x128xf32>
    %15 = vector.extract_strided_slice %13 {offsets = [0, 0], sizes = [8, 128], strides = [1, 1]} : vector<128x128xf32> to vector<8x128xf32>
    %16 = arith.subf %14, %15 : vector<8x128xf32>
    %17 = arith.mulf %16, %16 : vector<8x128xf32>
    %18 = vector.extract_strided_slice %8 {offsets = [32, 0], sizes = [8, 128], strides = [1, 1]} : vector<128x128xf32> to vector<8x128xf32>
    %19 = vector.extract_strided_slice %13 {offsets = [32, 0], sizes = [8, 128], strides = [1, 1]} : vector<128x128xf32> to vector<8x128xf32>
    %20 = arith.subf %18, %19 : vector<8x128xf32>
    %21 = arith.mulf %20, %20 : vector<8x128xf32>
    %22 = arith.addf %17, %21 : vector<8x128xf32>
    %23 = vector.extract_strided_slice %8 {offsets = [64, 0], sizes = [8, 128], strides = [1, 1]} : vector<128x128xf32> to vector<8x128xf32>
    %24 = vector.extract_strided_slice %13 {offsets = [64, 0], sizes = [8, 128], strides = [1, 1]} : vector<128x128xf32> to vector<8x128xf32>
    %25 = arith.subf %23, %24 : vector<8x128xf32>
    %26 = arith.mulf %25, %25 : vector<8x128xf32>
    %27 = arith.addf %22, %26 : vector<8x128xf32>
    %28 = vector.extract_strided_slice %8 {offsets = [96, 0], sizes = [8, 128], strides = [1, 1]} : vector<128x128xf32> to vector<8x128xf32>
    %29 = vector.extract_strided_slice %13 {offsets = [96, 0], sizes = [8, 128], strides = [1, 1]} : vector<128x128xf32> to vector<8x128xf32>
    %30 = arith.subf %28, %29 : vector<8x128xf32>
    %31 = arith.mulf %30, %30 : vector<8x128xf32>
    %32 = arith.addf %27, %31 : vector<8x128xf32>
    %33 = vector.extract_strided_slice %8 {offsets = [8, 0], sizes = [8, 128], strides = [1, 1]} : vector<128x128xf32> to vector<8x128xf32>
    %34 = vector.extract_strided_slice %13 {offsets = [8, 0], sizes = [8, 128], strides = [1, 1]} : vector<128x128xf32> to vector<8x128xf32>
    %35 = arith.subf %33, %34 : vector<8x128xf32>
    %36 = arith.mulf %35, %35 : vector<8x128xf32>
    %37 = vector.extract_strided_slice %8 {offsets = [40, 0], sizes = [8, 128], strides = [1, 1]} : vector<128x128xf32> to vector<8x128xf32>
    %38 = vector.extract_strided_slice %13 {offsets = [40, 0], sizes = [8, 128], strides = [1, 1]} : vector<128x128xf32> to vector<8x128xf32>
    %39 = arith.subf %37, %38 : vector<8x128xf32>
    %40 = arith.mulf %39, %39 : vector<8x128xf32>
    %41 = arith.addf %36, %40 : vector<8x128xf32>
    %42 = vector.extract_strided_slice %8 {offsets = [72, 0], sizes = [8, 128], strides = [1, 1]} : vector<128x128xf32> to vector<8x128xf32>
    %43 = vector.extract_strided_slice %13 {offsets = [72, 0], sizes = [8, 128], strides = [1, 1]} : vector<128x128xf32> to vector<8x128xf32>
    %44 = arith.subf %42, %43 : vector<8x128xf32>
    %45 = arith.mulf %44, %44 : vector<8x128xf32>
    %46 = arith.addf %41, %45 : vector<8x128xf32>
    %47 = vector.extract_strided_slice %8 {offsets = [104, 0], sizes = [8, 128], strides = [1, 1]} : vector<128x128xf32> to vector<8x128xf32>
    %48 = vector.extract_strided_slice %13 {offsets = [104, 0], sizes = [8, 128], strides = [1, 1]} : vector<128x128xf32> to vector<8x128xf32>
    %49 = arith.subf %47, %48 : vector<8x128xf32>
    %50 = arith.mulf %49, %49 : vector<8x128xf32>
    %51 = arith.addf %46, %50 : vector<8x128xf32>
    %52 = vector.extract_strided_slice %8 {offsets = [16, 0], sizes = [8, 128], strides = [1, 1]} : vector<128x128xf32> to vector<8x128xf32>
    %53 = vector.extract_strided_slice %13 {offsets = [16, 0], sizes = [8, 128], strides = [1, 1]} : vector<128x128xf32> to vector<8x128xf32>
    %54 = arith.subf %52, %53 : vector<8x128xf32>
    %55 = arith.mulf %54, %54 : vector<8x128xf32>
    %56 = vector.extract_strided_slice %8 {offsets = [48, 0], sizes = [8, 128], strides = [1, 1]} : vector<128x128xf32> to vector<8x128xf32>
    %57 = vector.extract_strided_slice %13 {offsets = [48, 0], sizes = [8, 128], strides = [1, 1]} : vector<128x128xf32> to vector<8x128xf32>
    %58 = arith.subf %56, %57 : vector<8x128xf32>
    %59 = arith.mulf %58, %58 : vector<8x128xf32>
    %60 = arith.addf %55, %59 : vector<8x128xf32>
    %61 = vector.extract_strided_slice %8 {offsets = [80, 0], sizes = [8, 128], strides = [1, 1]} : vector<128x128xf32> to vector<8x128xf32>
    %62 = vector.extract_strided_slice %13 {offsets = [80, 0], sizes = [8, 128], strides = [1, 1]} : vector<128x128xf32> to vector<8x128xf32>
    %63 = arith.subf %61, %62 : vector<8x128xf32>
    %64 = arith.mulf %63, %63 : vector<8x128xf32>
    %65 = arith.addf %60, %64 : vector<8x128xf32>
    %66 = vector.extract_strided_slice %8 {offsets = [112, 0], sizes = [8, 128], strides = [1, 1]} : vector<128x128xf32> to vector<8x128xf32>
    %67 = vector.extract_strided_slice %13 {offsets = [112, 0], sizes = [8, 128], strides = [1, 1]} : vector<128x128xf32> to vector<8x128xf32>
    %68 = arith.subf %66, %67 : vector<8x128xf32>
    %69 = arith.mulf %68, %68 : vector<8x128xf32>
    %70 = arith.addf %65, %69 : vector<8x128xf32>
    %71 = vector.extract_strided_slice %8 {offsets = [24, 0], sizes = [8, 128], strides = [1, 1]} : vector<128x128xf32> to vector<8x128xf32>
    %72 = vector.extract_strided_slice %13 {offsets = [24, 0], sizes = [8, 128], strides = [1, 1]} : vector<128x128xf32> to vector<8x128xf32>
    %73 = arith.subf %71, %72 : vector<8x128xf32>
    %74 = arith.mulf %73, %73 : vector<8x128xf32>
    %75 = vector.extract_strided_slice %8 {offsets = [56, 0], sizes = [8, 128], strides = [1, 1]} : vector<128x128xf32> to vector<8x128xf32>
    %76 = vector.extract_strided_slice %13 {offsets = [56, 0], sizes = [8, 128], strides = [1, 1]} : vector<128x128xf32> to vector<8x128xf32>
    %77 = arith.subf %75, %76 : vector<8x128xf32>
    %78 = arith.mulf %77, %77 : vector<8x128xf32>
    %79 = arith.addf %74, %78 : vector<8x128xf32>
    %80 = vector.extract_strided_slice %8 {offsets = [88, 0], sizes = [8, 128], strides = [1, 1]} : vector<128x128xf32> to vector<8x128xf32>
    %81 = vector.extract_strided_slice %13 {offsets = [88, 0], sizes = [8, 128], strides = [1, 1]} : vector<128x128xf32> to vector<8x128xf32>
    %82 = arith.subf %80, %81 : vector<8x128xf32>
    %83 = arith.mulf %82, %82 : vector<8x128xf32>
    %84 = arith.addf %79, %83 : vector<8x128xf32>
    %85 = vector.extract_strided_slice %8 {offsets = [120, 0], sizes = [8, 128], strides = [1, 1]} : vector<128x128xf32> to vector<8x128xf32>
    %86 = vector.extract_strided_slice %13 {offsets = [120, 0], sizes = [8, 128], strides = [1, 1]} : vector<128x128xf32> to vector<8x128xf32>
    %87 = arith.subf %85, %86 : vector<8x128xf32>
    %88 = arith.mulf %87, %87 : vector<8x128xf32>
    %89 = arith.addf %84, %88 : vector<8x128xf32>
    %90 = arith.addf %32, %51 : vector<8x128xf32>
    %91 = arith.addf %70, %89 : vector<8x128xf32>
    %92 = arith.addf %90, %91 : vector<8x128xf32>
    %93 = arith.cmpi eq, %1, %3 : i32
    %cst_12 = arith.constant 1.000000e+00 : f32
    %cst_13 = arith.constant 2.000000e+00 : f32
    %94 = arith.select %93, %cst_12, %cst_13 : f32
    %95 = vector.broadcast %94 : f32 to vector<8x128xf32>
    %96 = arith.mulf %92, %95 : vector<8x128xf32>
    %c0_14 = arith.constant 0 : index
    %c0_15 = arith.constant 0 : index
    %c0_16 = arith.constant 0 : index
    %c0_17 = arith.constant 0 : index
    %97 = vector.load %arg8[%c0_14, %c0_15, %c0_16, %c0_17] : memref<1x1x8x128xf32, #tpu.memory_space<vmem>>, vector<1x1x8x128xf32>
    %98 = vector.shape_cast %97 : vector<1x1x8x128xf32> to vector<8x128xf32>
    %99 = vector.shape_cast %96 : vector<8x128xf32> to vector<1x1x8x128xf32>
    tpu.vector_store %arg8[%c0_14, %c0_15, %c0_16, %c0_17], %99 {strides = array<i32>} : memref<1x1x8x128xf32, #tpu.memory_space<vmem>>, vector<1x1x8x128xf32>,
    return
  }
  func.func @transform_0(%arg0: i32, %arg1: i32, %arg2: memref<1xi32, #tpu.memory_space<smem>>, %arg3: memref<1xi32, #tpu.memory_space<smem>>) -> (i32, i32, i32) {
    %0 = arith.index_cast %arg1 : i32 to index
    %1 = memref.load %arg2[%0] : memref<1xi32, #tpu.memory_space<smem>>
    %c0_i32 = arith.constant 0 : i32
    %c0_i32_0 = arith.constant 0 : i32
    return %arg0, %1, %c0_i32 : i32, i32, i32
  }
  func.func @transform_1(%arg0: i32, %arg1: i32, %arg2: memref<1xi32, #tpu.memory_space<smem>>, %arg3: memref<1xi32, #tpu.memory_space<smem>>) -> (i32, i32, i32) {
    %0 = arith.index_cast %arg1 : i32 to index
    %1 = memref.load %arg2[%0] : memref<1xi32, #tpu.memory_space<smem>>
    %c0_i32 = arith.constant 0 : i32
    %c0_i32_0 = arith.constant 0 : i32
    return %arg0, %1, %c0_i32 : i32, i32, i32
  }
  func.func @transform_2(%arg0: i32, %arg1: i32, %arg2: memref<1xi32, #tpu.memory_space<smem>>, %arg3: memref<1xi32, #tpu.memory_space<smem>>) -> (i32, i32, i32) {
    %0 = arith.index_cast %arg1 : i32 to index
    %1 = memref.load %arg3[%0] : memref<1xi32, #tpu.memory_space<smem>>
    %c0_i32 = arith.constant 0 : i32
    %c0_i32_0 = arith.constant 0 : i32
    return %arg0, %1, %c0_i32 : i32, i32, i32
  }
  func.func @transform_3(%arg0: i32, %arg1: i32, %arg2: memref<1xi32, #tpu.memory_space<smem>>, %arg3: memref<1xi32, #tpu.memory_space<smem>>) -> (i32, i32, i32) {
    %0 = arith.index_cast %arg1 : i32 to index
    %1 = memref.load %arg3[%0] : memref<1xi32, #tpu.memory_space<smem>>
    %c0_i32 = arith.constant 0 : i32
    %c0_i32_0 = arith.constant 0 : i32
    return %arg0, %1, %c0_i32 : i32, i32, i32
  }
  func.func @transform_4(%arg0: i32, %arg1: i32, %arg2: memref<1xi32, #tpu.memory_space<smem>>, %arg3: memref<1xi32, #tpu.memory_space<smem>>) -> (i32, i32, i32, i32) {
    %c0_i32 = arith.constant 0 : i32
    %c0_i32_0 = arith.constant 0 : i32
    %c0_i32_1 = arith.constant 0 : i32
    return %arg0, %arg1, %c0_i32, %c0_i32_0 : i32, i32, i32, i32
  }
}

</mosaic_0001>

<llo_original>
// kernel: tpu_custom_call.1
$region0: #{tpu_custom_call.1}
  #allocation0 [shape = 'u32[]', space=smem, size = 0x4, offset = 0x4, fixed_abs, tag = 'smem constant byte address 0x4 - core index']
  #allocation1 [shape = 'u32[72,128]{1,0:T(1,128)}', space=vmem, size = 0x9000, scoped, tag = 'internal scratch']
  #allocation2 [shape = 's32[1]{0}', space=sflag, size = 0x4, scoped, tag = 'scoped memory for tpu_custom_call.1']
  #allocation3 [shape = 's32[1]{0:T(128)S(6)}', space=smem, size = 0x200, scoped, tag = 'prefetched SMEM operand 0']
  #allocation4 [shape = 's32[1]{0:T(128)S(6)}', space=smem, size = 0x200, scoped, tag = 'prefetched SMEM operand 1']
  %s0 = inlined_call_operand.<no memory space> [shape: s32[1], index: 0, kind: input, shape index: {}]
  %s1 = inlined_call_operand.<no memory space> [shape: s32[1], index: 1, kind: input, shape index: {}]
  %s2 = inlined_call_operand.vmem [shape: f32[2,128,32], index: 2, kind: input, shape index: {}]
  %s3 = inlined_call_operand.vmem [shape: f32[2,128,32], index: 3, kind: input, shape index: {}]
  %s4 = inlined_call_operand.vmem [shape: f32[2,128,32], index: 4, kind: input, shape index: {}]
  %s5 = inlined_call_operand.vmem [shape: f32[2,128,32], index: 5, kind: input, shape index: {}]
  %s6 = inlined_call_operand.hbm [shape: f32[2,1,8,128], index: 6, kind: output, shape index: {}]
  %s7 = sld [smem:[#allocation0]]
  $region49: #{tpu_custom_call.1} parent=0
    _
  %s9 = ssub.s32 1, %s7
  %s10 = scalar_select 0, %s9, %s7
  %11 = sst [smem:[#allocation3]] %s0
  %12 = sst [smem:[#allocation4]] %s1
  $region1: #{tpu_custom_call.1} parent=0
    #allocation5 [shape = 'u8[8192]{0}', space=vmem, size = 0x2000, scoped, tag = 'output window, operand 0']
    #allocation6 [shape = 's32[2]{0}', space=sflag, size = 0x8, scoped, tag = 'scoped memory for tpu_custom_call.1']
    %13 = vsyncpa [#allocation6], 0
    %s14 = scalar_lea.sflag [#allocation6], 1
    %15 = vsyncpa %s14, 0
    loop: start=0, step=1, limit=4
    $region2: #{tpu_custom_call.1} parent=1 // loop_pre_header
      _
    $region3: #{tpu_custom_call.1} parent=1 // loop_header
      %s17 = sphi 0, %s21
      %p18 = scmp.ge.s32.totalorder %s17, 4
      %s24 = sphi 0, %s36
      %s25 = sphi 0, %s32
      %s26 = sphi 0, %s24
      %s27 = sphi 0, %s25
      %s28 = sphi 0, %s26
      %s29 = sphi 0, %s27
      %s43 = sphi 0, %s45
      %s46 = sphi 0, %s43
      %s47 = sphi 0, %s46
      %s63 = sphi 0, %s47
      %s73 = sphi 0, %s75
      %s76 = sphi 0, %s73
      %s77 = sphi 0, %s76
      %s93 = sphi 0, %s77
      %s103 = sphi 0, %s105
      %s106 = sphi 0, %s103
      %s107 = sphi 0, %s106
      %s123 = sphi 0, %s107
      %s133 = sphi 0, %s135
      %s136 = sphi 0, %s133
      %s137 = sphi 0, %s136
      %s153 = sphi 0, %s137
      %s161 = sphi 0, %s163
      %s164 = sphi 0, %s161
      %s165 = sphi 0, %s164
      %s181 = sphi 0, %s165
    $region4: #{tpu_custom_call.1} parent=1 // loop_header_branch
      %20 = sbr.rel (%p18) target = $region8
    $region5: #{tpu_custom_call.1} parent=1 // loop_body
      %s22 = ssub.s32 %s17, 1
      %s23 = ssub.s32 %s17, 2
      %s30 = sadd.s32 1, %s25
      %p31 = scmp.ge.s32.totalorder %s30, 1
      %s32 = scalar_select %p31, 0, %s30
      %s33 = sadd.s32 1, %s24
      %s34 = scalar_select %p31, %s33, %s24
      %p35 = scmp.ge.s32.totalorder %s34, 2
      %s36 = scalar_select %p35, 0, %s34
      %s37 = sld [smem:[#allocation3 + %s25]]
      %s38 = sld [smem:[#allocation3 + %s32]]
      %s39 = ssub.s32 %s24, %s36
      %s40 = ssub.s32 %s37, %s38
      %s41 = sor.u32 %s39, %s40
      %p42 = scmp.eq.s32.totalorder %s41, 0
      %s44 = sadd.s32 %s43, 1
      %s45 = scalar_select %p42, %s43, %s44
      %p48 = pneg %p42
      %p49 = scmp.eq.s32.totalorder %s17, 1
      %p50 = por %p48, %p49
      %p51 = scmp.ne.s32.totalorder %s43, %s46
      %p52 = scmp.eq.s32.totalorder %s17, 0
      %p53 = por %p51, %p52
      %p54 = scmp.ne.s32.totalorder %s43, %s46
      %p55 = scmp.eq.s32.totalorder %s22, 1
      %p56 = por %p54, %p55
      %p57 = scmp.ne.s32.totalorder %s46, %s47
      %p58 = scmp.eq.s32.totalorder %s22, 0
      %p59 = por %p57, %p58
      %p60 = scmp.ne.s32.totalorder %s46, %s47
      %p61 = scmp.eq.s32.totalorder %s23, 1
      %p62 = por %p60, %p61
      %p64 = scmp.ne.s32.totalorder %s47, %s63
      %p65 = scmp.eq.s32.totalorder %s23, 0
      %p66 = por %p64, %p65
      %s67 = sld [smem:[#allocation3 + %s25]]
      %s68 = sld [smem:[#allocation3 + %s32]]
      %s69 = ssub.s32 %s24, %s36
      %s70 = ssub.s32 %s67, %s68
      %s71 = sor.u32 %s69, %s70
      %p72 = scmp.eq.s32.totalorder %s71, 0
      %s74 = sadd.s32 %s73, 1
      %s75 = scalar_select %p72, %s73, %s74
      %p78 = pneg %p72
      %p79 = scmp.eq.s32.totalorder %s17, 1
      %p80 = por %p78, %p79
      %p81 = scmp.ne.s32.totalorder %s73, %s76
      %p82 = scmp.eq.s32.totalorder %s17, 0
      %p83 = por %p81, %p82
      %p84 = scmp.ne.s32.totalorder %s73, %s76
      %p85 = scmp.eq.s32.totalorder %s22, 1
      %p86 = por %p84, %p85
      %p87 = scmp.ne.s32.totalorder %s76, %s77
      %p88 = scmp.eq.s32.totalorder %s22, 0
      %p89 = por %p87, %p88
      %p90 = scmp.ne.s32.totalorder %s76, %s77
      %p91 = scmp.eq.s32.totalorder %s23, 1
      %p92 = por %p90, %p91
      %p94 = scmp.ne.s32.totalorder %s77, %s93
      %p95 = scmp.eq.s32.totalorder %s23, 0
      %p96 = por %p94, %p95
      %s97 = sld [smem:[#allocation4 + %s25]]
      %s98 = sld [smem:[#allocation4 + %s32]]
      %s99 = ssub.s32 %s24, %s36
      %s100 = ssub.s32 %s97, %s98
      %s101 = sor.u32 %s99, %s100
      %p102 = scmp.eq.s32.totalorder %s101, 0
      %s104 = sadd.s32 %s103, 1
      %s105 = scalar_select %p102, %s103, %s104
      %p108 = pneg %p102
      %p109 = scmp.eq.s32.totalorder %s17, 1
      %p110 = por %p108, %p109
      %p111 = scmp.ne.s32.totalorder %s103, %s106
      %p112 = scmp.eq.s32.totalorder %s17, 0
      %p113 = por %p111, %p112
      %p114 = scmp.ne.s32.totalorder %s103, %s106
      %p115 = scmp.eq.s32.totalorder %s22, 1
      %p116 = por %p114, %p115
      %p117 = scmp.ne.s32.totalorder %s106, %s107
      %p118 = scmp.eq.s32.totalorder %s22, 0
      %p119 = por %p117, %p118
      %p120 = scmp.ne.s32.totalorder %s106, %s107
      %p121 = scmp.eq.s32.totalorder %s23, 1
      %p122 = por %p120, %p121
      %p124 = scmp.ne.s32.totalorder %s107, %s123
      %p125 = scmp.eq.s32.totalorder %s23, 0
      %p126 = por %p124, %p125
      %s127 = sld [smem:[#allocation4 + %s25]]
      %s128 = sld [smem:[#allocation4 + %s32]]
      %s129 = ssub.s32 %s24, %s36
      %s130 = ssub.s32 %s127, %s128
      %s131 = sor.u32 %s129, %s130
      %p132 = scmp.eq.s32.totalorder %s131, 0
      %s134 = sadd.s32 %s133, 1
      %s135 = scalar_select %p132, %s133, %s134
      %p138 = pneg %p132
      %p139 = scmp.eq.s32.totalorder %s17, 1
      %p140 = por %p138, %p139
      %p141 = scmp.ne.s32.totalorder %s133, %s136
      %p142 = scmp.eq.s32.totalorder %s17, 0
      %p143 = por %p141, %p142
      %p144 = scmp.ne.s32.totalorder %s133, %s136
      %p145 = scmp.eq.s32.totalorder %s22, 1
      %p146 = por %p144, %p145
      %p147 = scmp.ne.s32.totalorder %s136, %s137
      %p148 = scmp.eq.s32.totalorder %s22, 0
      %p149 = por %p147, %p148
      %p150 = scmp.ne.s32.totalorder %s136, %s137
      %p151 = scmp.eq.s32.totalorder %s23, 1
      %p152 = por %p150, %p151
      %p154 = scmp.ne.s32.totalorder %s137, %s153
      %p155 = scmp.eq.s32.totalorder %s23, 0
      %p156 = por %p154, %p155
      %s157 = ssub.s32 %s24, %s36
      %s158 = ssub.s32 %s25, %s32
      %s159 = sor.u32 %s157, %s158
      %p160 = scmp.eq.s32.totalorder %s159, 0
      %s162 = sadd.s32 %s161, 1
      %s163 = scalar_select %p160, %s161, %s162
      %p166 = pneg %p160
      %p167 = scmp.eq.s32.totalorder %s17, 1
      %p168 = por %p166, %p167
      %p169 = scmp.ne.s32.totalorder %s161, %s164
      %p170 = scmp.eq.s32.totalorder %s17, 0
      %p171 = por %p169, %p170
      %p172 = scmp.ne.s32.totalorder %s161, %s164
      %p173 = scmp.eq.s32.totalorder %s22, 1
      %p174 = por %p172, %p173
      %p175 = scmp.ne.s32.totalorder %s164, %s165
      %p176 = scmp.eq.s32.totalorder %s22, 0
      %p177 = por %p175, %p176
      %p178 = scmp.ne.s32.totalorder %s164, %s165
      %p179 = scmp.eq.s32.totalorder %s23, 1
      %p180 = por %p178, %p179
      %p182 = scmp.ne.s32.totalorder %s165, %s181
      %p183 = scmp.eq.s32.totalorder %s23, 0
      %p184 = por %p182, %p183
      %p185 = scmp.le.s32.totalorder 1, %s17
      %p186 = scmp.lt.s32.totalorder %s17, 3
      %p187 = pnand %p185, %p186
      %p188 = pneg %p187
      // Predicated region
      $region9: #{tpu_custom_call.1} parent=5 // pred_check
        _
      $region10: #{tpu_custom_call.1} parent=5 // pred_check_branch
        %190 = sbr.rel (%p187) target = $region12
      $region11: #{tpu_custom_call.1} parent=5 // pred_region
        %s191 = ssub.s32 %s17, 1
      $region12: #{tpu_custom_call.1} parent=5 // pred_fallthru
        _
      %p192 = scmp.lt.s32.totalorder %s17, 2
      // Predicated region
      $region13: #{tpu_custom_call.1} parent=5 // pred_check
        %p193 = pneg %p192
      $region14: #{tpu_custom_call.1} parent=5 // pred_check_branch
        %195 = sbr.rel (%p193) target = $region16
      $region15: #{tpu_custom_call.1} parent=5 // pred_region
        // Predicated region
        $region17: #{tpu_custom_call.1} parent=15 // pred_check
          %p196 = pneg %p53
        $region18: #{tpu_custom_call.1} parent=15 // pred_check_branch
          %198 = sbr.rel (%p196) target = $region20
        $region19: #{tpu_custom_call.1} parent=15 // pred_region
          %s199 = sld [smem:[#allocation3 + %s25]]
          %s200 = smul.u32 16, %s199
          %p201 = scmp.lt.s32.totalorder %s24, 1
          %s202 = scalar_select %p201, %s24, 1
          %p203 = scmp.lt.s32.totalorder %s200, 15
          %s204 = scalar_select %p203, %s200, 15
          %s205 = smul.addr %s202, 16
          %s206 = sadd.s32 %s204, %s205
          %s207 = smul.addr %s206, 8
          %s208 = scalar_lea.vmem %s2, %s207
          %s209 = sld [smem:[#allocation3 + %s25]]
          %s210 = smul.u32 16, %s209
        $region20: #{tpu_custom_call.1} parent=15 // pred_fallthru
          _
        // Predicated region
        $region21: #{tpu_custom_call.1} parent=15 // pred_check
          %p211 = pneg %p83
        $region22: #{tpu_custom_call.1} parent=15 // pred_check_branch
          %213 = sbr.rel (%p211) target = $region24
        $region23: #{tpu_custom_call.1} parent=15 // pred_region
          %s214 = sld [smem:[#allocation3 + %s25]]
          %s215 = smul.u32 16, %s214
          %p216 = scmp.lt.s32.totalorder %s24, 1
          %s217 = scalar_select %p216, %s24, 1
          %p218 = scmp.lt.s32.totalorder %s215, 15
          %s219 = scalar_select %p218, %s215, 15
          %s220 = smul.addr %s217, 16
          %s221 = sadd.s32 %s219, %s220
          %s222 = smul.addr %s221, 8
          %s223 = scalar_lea.vmem %s3, %s222
          %s224 = sld [smem:[#allocation3 + %s25]]
          %s225 = smul.u32 16, %s224
        $region24: #{tpu_custom_call.1} parent=15 // pred_fallthru
          _
        // Predicated region
        $region25: #{tpu_custom_call.1} parent=15 // pred_check
          %p226 = pneg %p113
        $region26: #{tpu_custom_call.1} parent=15 // pred_check_branch
          %228 = sbr.rel (%p226) target = $region28
        $region27: #{tpu_custom_call.1} parent=15 // pred_region
          %s229 = sld [smem:[#allocation4 + %s25]]
          %s230 = smul.u32 16, %s229
          %p231 = scmp.lt.s32.totalorder %s24, 1
          %s232 = scalar_select %p231, %s24, 1
          %p233 = scmp.lt.s32.totalorder %s230, 15
          %s234 = scalar_select %p233, %s230, 15
          %s235 = smul.addr %s232, 16
          %s236 = sadd.s32 %s234, %s235
          %s237 = smul.addr %s236, 8
          %s238 = scalar_lea.vmem %s4, %s237
          %s239 = sld [smem:[#allocation4 + %s25]]
          %s240 = smul.u32 16, %s239
        $region28: #{tpu_custom_call.1} parent=15 // pred_fallthru
          _
        // Predicated region
        $region29: #{tpu_custom_call.1} parent=15 // pred_check
          %p241 = pneg %p143
        $region30: #{tpu_custom_call.1} parent=15 // pred_check_branch
          %243 = sbr.rel (%p241) target = $region32
        $region31: #{tpu_custom_call.1} parent=15 // pred_region
          %s244 = sld [smem:[#allocation4 + %s25]]
          %s245 = smul.u32 16, %s244
          %p246 = scmp.lt.s32.totalorder %s24, 1
          %s247 = scalar_select %p246, %s24, 1
          %p248 = scmp.lt.s32.totalorder %s245, 15
          %s249 = scalar_select %p248, %s245, 15
          %s250 = smul.addr %s247, 16
          %s251 = sadd.s32 %s249, %s250
          %s252 = smul.addr %s251, 8
          %s253 = scalar_lea.vmem %s5, %s252
          %s254 = sld [smem:[#allocation4 + %s25]]
          %s255 = smul.u32 16, %s254
        $region32: #{tpu_custom_call.1} parent=15 // pred_fallthru
          _
      $region16: #{tpu_custom_call.1} parent=5 // pred_fallthru
        _
      %p256 = scmp.le.s32.totalorder 1, %s17
      %p257 = scmp.lt.s32.totalorder %s17, 3
      %p258 = pnand %p256, %p257
      %p259 = pneg %p258
      // Predicated region
      $region33: #{tpu_custom_call.1} parent=5 // pred_check
        _
      $region34: #{tpu_custom_call.1} parent=5 // pred_check_branch
        %261 = sbr.rel (%p258) target = $region36
      $region35: #{tpu_custom_call.1} parent=5 // pred_region
        %s262 = ssub.s32 %s17, 1
        %s263 = sld [smem:[#allocation3 + %s27]]
        %s264 = smul.u32 16, %s263
        %p265 = scmp.lt.s32.totalorder %s26, 1
        %s266 = scalar_select %p265, %s26, 1
        %p267 = scmp.lt.s32.totalorder %s264, 15
        %s268 = scalar_select %p267, %s264, 15
        %s269 = smul.addr %s266, 16
        %s270 = sadd.s32 %s268, %s269
        %s271 = smul.addr %s270, 8
        %s272 = scalar_lea.vmem %s2, %s271
        %p273 = pneg %p59
        %p274 = pneg %p56
        %s275 = sld [smem:[#allocation3 + %s27]]
        %s276 = smul.u32 16, %s275
        %p277 = scmp.lt.s32.totalorder %s26, 1
        %s278 = scalar_select %p277, %s26, 1
        %p279 = scmp.lt.s32.totalorder %s276, 15
        %s280 = scalar_select %p279, %s276, 15
        %s281 = smul.addr %s278, 16
        %s282 = sadd.s32 %s280, %s281
        %s283 = smul.addr %s282, 8
        %s284 = scalar_lea.vmem %s3, %s283
        %p285 = pneg %p89
        %p286 = pneg %p86
        %s287 = sld [smem:[#allocation4 + %s27]]
        %s288 = smul.u32 16, %s287
        %p289 = scmp.lt.s32.totalorder %s26, 1
        %s290 = scalar_select %p289, %s26, 1
        %p291 = scmp.lt.s32.totalorder %s288, 15
        %s292 = scalar_select %p291, %s288, 15
        %s293 = smul.addr %s290, 16
        %s294 = sadd.s32 %s292, %s293
        %s295 = smul.addr %s294, 8
        %s296 = scalar_lea.vmem %s4, %s295
        %p297 = pneg %p119
        %p298 = pneg %p116
        %s299 = sld [smem:[#allocation4 + %s27]]
        %s300 = smul.u32 16, %s299
        %p301 = scmp.lt.s32.totalorder %s26, 1
        %s302 = scalar_select %p301, %s26, 1
        %p303 = scmp.lt.s32.totalorder %s300, 15
        %s304 = scalar_select %p303, %s300, 15
        %s305 = smul.addr %s302, 16
        %s306 = sadd.s32 %s304, %s305
        %s307 = smul.addr %s306, 8
        %s308 = scalar_lea.vmem %s5, %s307
        %p309 = pneg %p149
        %p310 = pneg %p146
        %p311 = pneg %p177
        %p312 = pneg %p174
        %s313 = sand.u32 %s164, 1
        %s314 = scalar_lea.sflag [#allocation6], %s313
        %s315 = sand.u32 %s164, 1
        %s316 = smul.addr %s315, 8
        %s317 = scalar_lea.vmem [#allocation5], %s316
        %s318 = sld [smem:[#allocation3 + %s27]]
        %s319 = smul.u32 16, %s318
        %p320 = scmp.lt.s32.totalorder %s26, 1
        %s321 = scalar_select %p320, %s26, 1
        %p322 = scmp.lt.s32.totalorder %s319, 15
        %s323 = scalar_select %p322, %s319, 15
        %s324 = smul.addr %s321, 16
        %s325 = sadd.s32 %s323, %s324
        %s326 = smul.addr %s325, 8
        %s327 = scalar_lea.vmem %s2, %s326
        %s328 = sld [smem:[#allocation3 + %s27]]
        %s329 = smul.u32 16, %s328
        %s330 = sld [smem:[#allocation3 + %s27]]
        %s331 = smul.u32 16, %s330
        %p332 = scmp.lt.s32.totalorder %s26, 1
        %s333 = scalar_select %p332, %s26, 1
        %p334 = scmp.lt.s32.totalorder %s331, 15
        %s335 = scalar_select %p334, %s331, 15
        %s336 = smul.addr %s333, 16
        %s337 = sadd.s32 %s335, %s336
        %s338 = smul.addr %s337, 8
        %s339 = scalar_lea.vmem %s3, %s338
        %s340 = sld [smem:[#allocation3 + %s27]]
        %s341 = smul.u32 16, %s340
        %s342 = sld [smem:[#allocation4 + %s27]]
        %s343 = smul.u32 16, %s342
        %p344 = scmp.lt.s32.totalorder %s26, 1
        %s345 = scalar_select %p344, %s26, 1
        %p346 = scmp.lt.s32.totalorder %s343, 15
        %s347 = scalar_select %p346, %s343, 15
        %s348 = smul.addr %s345, 16
        %s349 = sadd.s32 %s347, %s348
        %s350 = smul.addr %s349, 8
        %s351 = scalar_lea.vmem %s4, %s350
        %s352 = sld [smem:[#allocation4 + %s27]]
        %s353 = smul.u32 16, %s352
        %s354 = sld [smem:[#allocation4 + %s27]]
        %s355 = smul.u32 16, %s354
        %p356 = scmp.lt.s32.totalorder %s26, 1
        %s357 = scalar_select %p356, %s26, 1
        %p358 = scmp.lt.s32.totalorder %s355, 15
        %s359 = scalar_select %p358, %s355, 15
        %s360 = smul.addr %s357, 16
        %s361 = sadd.s32 %s359, %s360
        %s362 = smul.addr %s361, 8
        %s363 = scalar_lea.vmem %s5, %s362
        %s364 = sld [smem:[#allocation4 + %s27]]
        %s365 = smul.u32 16, %s364
        %s366 = sld [smem:[#allocation3 + %s27]]
        %s367 = sld [smem:[#allocation4 + %s27]]
        %v368 = vld [vmem:[%s327] sm:$0xff]
        %v369 = vld [vmem:[%s327 + $0x8] sm:$0xff]
        %v370 = vld [vmem:[%s327 + $0x10] sm:$0xff]
        %v371 = vld [vmem:[%s327 + $0x18] sm:$0xff]
        %v372 = vld [vmem:[%s327 + $0x20] sm:$0xff]
        %v373 = vld [vmem:[%s327 + $0x28] sm:$0xff]
        %v374 = vld [vmem:[%s327 + $0x30] sm:$0xff]
        %v375 = vld [vmem:[%s327 + $0x38] sm:$0xff]
        %v376 = vld [vmem:[%s327 + $0x40] sm:$0xff]
        %v377 = vld [vmem:[%s327 + $0x48] sm:$0xff]
        %v378 = vld [vmem:[%s327 + $0x50] sm:$0xff]
        %v379 = vld [vmem:[%s327 + $0x58] sm:$0xff]
        %v380 = vld [vmem:[%s327 + $0x60] sm:$0xff]
        %v381 = vld [vmem:[%s327 + $0x68] sm:$0xff]
        %v382 = vld [vmem:[%s327 + $0x70] sm:$0xff]
        %v383 = vld [vmem:[%s327 + $0x78] sm:$0xff]
        %v384 = vld [vmem:[%s351] sm:$0xff]
        %v385 = vld [vmem:[%s351 + $0x8] sm:$0xff]
        %v386 = vld [vmem:[%s351 + $0x10] sm:$0xff]
        %v387 = vld [vmem:[%s351 + $0x18] sm:$0xff]
        %v388 = vld [vmem:[%s351 + $0x20] sm:$0xff]
        %v389 = vld [vmem:[%s351 + $0x28] sm:$0xff]
        %v390 = vld [vmem:[%s351 + $0x30] sm:$0xff]
        %v391 = vld [vmem:[%s351 + $0x38] sm:$0xff]
        %v392 = vld [vmem:[%s351 + $0x40] sm:$0xff]
        %v393 = vld [vmem:[%s351 + $0x48] sm:$0xff]
        %v394 = vld [vmem:[%s351 + $0x50] sm:$0xff]
        %v395 = vld [vmem:[%s351 + $0x58] sm:$0xff]
        %v396 = vld [vmem:[%s351 + $0x60] sm:$0xff]
        %v397 = vld [vmem:[%s351 + $0x68] sm:$0xff]
        %v398 = vld [vmem:[%s351 + $0x70] sm:$0xff]
        %v399 = vld [vmem:[%s351 + $0x78] sm:$0xff]
        %vm400 = vcmask 261120
        %v402 = vsel %vm400, %v368, 0
        %v405 = vsel %vm400, %v369, 0
        %v408 = vsel %vm400, %v370, 0
        %v411 = vsel %vm400, %v371, 0
        %v414 = vsel %vm400, %v372, 0
        %v417 = vsel %vm400, %v373, 0
        %v420 = vsel %vm400, %v374, 0
        %v423 = vsel %vm400, %v375, 0
        %v426 = vsel %vm400, %v376, 0
        %v429 = vsel %vm400, %v377, 0
        %v432 = vsel %vm400, %v378, 0
        %v435 = vsel %vm400, %v379, 0
        %v438 = vsel %vm400, %v380, 0
        %v441 = vsel %vm400, %v381, 0
        %v444 = vsel %vm400, %v382, 0
        %v447 = vsel %vm400, %v383, 0
        %v450 = vsel %vm400, %v384, 0
        %v453 = vsel %vm400, %v385, 0
        %v456 = vsel %vm400, %v386, 0
        %v459 = vsel %vm400, %v387, 0
        %v462 = vsel %vm400, %v388, 0
        %v465 = vsel %vm400, %v389, 0
        %v468 = vsel %vm400, %v390, 0
        %v471 = vsel %vm400, %v391, 0
        %v474 = vsel %vm400, %v392, 0
        %v477 = vsel %vm400, %v393, 0
        %v480 = vsel %vm400, %v394, 0
        %v483 = vsel %vm400, %v395, 0
        %v486 = vsel %vm400, %v396, 0
        %v489 = vsel %vm400, %v397, 0
        %v492 = vsel %vm400, %v398, 0
        %v495 = vsel %vm400, %v399, 0
        %497 = vmatpush.xpose.msra.mxu0 %v495
        %498 = vmatpush.xpose.msra.mxu0 %v492
        %499 = vmatpush.xpose.msra.mxu0 %v489
        %500 = vmatpush.xpose.msra.mxu0 %v486
        %501 = vmatpush.xpose.msra.mxu0 %v483
        %502 = vmatpush.xpose.msra.mxu0 %v480
        %503 = vmatpush.xpose.msra.mxu0 %v477
        %504 = vmatpush.xpose.msra.mxu0 %v474
        %505 = vmatpush.xpose.msra.mxu0 %v471
        %506 = vmatpush.xpose.msra.mxu0 %v468
        %507 = vmatpush.xpose.msra.mxu0 %v465
        %508 = vmatpush.xpose.msra.mxu0 %v462
        %509 = vmatpush.xpose.msra.mxu0 %v459
        %510 = vmatpush.xpose.msra.mxu0 %v456
        %511 = vmatpush.xpose.msra.mxu0 %v453
        %512 = vmatpush.xpose.msra.mxu0 %v450
        %513 = vmatmul.f32.gmra.mxu0 %v402
        %v514 = vpop.f32.mrf.mxu0
        %v515 = vadd.f32 0.0, %v514
        %516 = vmatmul.f32.gmra.mxu0 %v405
        %v517 = vpop.f32.mrf.mxu0
        %v518 = vadd.f32 0.0, %v517
        %519 = vmatmul.f32.gmra.mxu0 %v408
        %v520 = vpop.f32.mrf.mxu0
        %v521 = vadd.f32 0.0, %v520
        %522 = vmatmul.f32.gmra.mxu0 %v411
        %v523 = vpop.f32.mrf.mxu0
        %v524 = vadd.f32 0.0, %v523
        %525 = vmatmul.f32.gmra.mxu0 %v414
        %v526 = vpop.f32.mrf.mxu0
        %v527 = vadd.f32 0.0, %v526
        %528 = vmatmul.f32.gmra.mxu0 %v417
        %v529 = vpop.f32.mrf.mxu0
        %v530 = vadd.f32 0.0, %v529
        %531 = vmatmul.f32.gmra.mxu0 %v420
        %v532 = vpop.f32.mrf.mxu0
        %v533 = vadd.f32 0.0, %v532
        %534 = vmatmul.f32.gmra.mxu0 %v423
        %v535 = vpop.f32.mrf.mxu0
        %v536 = vadd.f32 0.0, %v535
        %537 = vmatmul.f32.gmra.mxu0 %v426
        %v538 = vpop.f32.mrf.mxu0
        %v539 = vadd.f32 0.0, %v538
        %540 = vmatmul.f32.gmra.mxu0 %v429
        %v541 = vpop.f32.mrf.mxu0
        %v542 = vadd.f32 0.0, %v541
        %543 = vmatmul.f32.gmra.mxu0 %v432
        %v544 = vpop.f32.mrf.mxu0
        %v545 = vadd.f32 0.0, %v544
        %546 = vmatmul.f32.gmra.mxu0 %v435
        %v547 = vpop.f32.mrf.mxu0
        %v548 = vadd.f32 0.0, %v547
        %549 = vmatmul.f32.gmra.mxu0 %v438
        %v550 = vpop.f32.mrf.mxu0
        %v551 = vadd.f32 0.0, %v550
        %552 = vmatmul.f32.gmra.mxu0 %v441
        %v553 = vpop.f32.mrf.mxu0
        %v554 = vadd.f32 0.0, %v553
        %555 = vmatmul.f32.gmra.mxu0 %v444
        %v556 = vpop.f32.mrf.mxu0
        %v557 = vadd.f32 0.0, %v556
        %558 = vmatmul.f32.gmra.mxu0 %v447
        %v559 = vpop.f32.mrf.mxu0
        %v560 = vadd.f32 0.0, %v559
        %561 = vdwg.mxu0
        %v562 = vld [vmem:[%s339] sm:$0xff]
        %v563 = vld [vmem:[%s339 + $0x8] sm:$0xff]
        %v564 = vld [vmem:[%s339 + $0x10] sm:$0xff]
        %v565 = vld [vmem:[%s339 + $0x18] sm:$0xff]
        %v566 = vld [vmem:[%s339 + $0x20] sm:$0xff]
        %v567 = vld [vmem:[%s339 + $0x28] sm:$0xff]
        %v568 = vld [vmem:[%s339 + $0x30] sm:$0xff]
        %v569 = vld [vmem:[%s339 + $0x38] sm:$0xff]
        %v570 = vld [vmem:[%s339 + $0x40] sm:$0xff]
        %v571 = vld [vmem:[%s339 + $0x48] sm:$0xff]
        %v572 = vld [vmem:[%s339 + $0x50] sm:$0xff]
        %v573 = vld [vmem:[%s339 + $0x58] sm:$0xff]
        %v574 = vld [vmem:[%s339 + $0x60] sm:$0xff]
        %v575 = vld [vmem:[%s339 + $0x68] sm:$0xff]
        %v576 = vld [vmem:[%s339 + $0x70] sm:$0xff]
        %v577 = vld [vmem:[%s339 + $0x78] sm:$0xff]
        %v578 = vld [vmem:[%s363] sm:$0xff]
        %v579 = vld [vmem:[%s363 + $0x8] sm:$0xff]
        %v580 = vld [vmem:[%s363 + $0x10] sm:$0xff]
        %v581 = vld [vmem:[%s363 + $0x18] sm:$0xff]
        %v582 = vld [vmem:[%s363 + $0x20] sm:$0xff]
        %v583 = vld [vmem:[%s363 + $0x28] sm:$0xff]
        %v584 = vld [vmem:[%s363 + $0x30] sm:$0xff]
        %v585 = vld [vmem:[%s363 + $0x38] sm:$0xff]
        %v586 = vld [vmem:[%s363 + $0x40] sm:$0xff]
        %v587 = vld [vmem:[%s363 + $0x48] sm:$0xff]
        %v588 = vld [vmem:[%s363 + $0x50] sm:$0xff]
        %v589 = vld [vmem:[%s363 + $0x58] sm:$0xff]
        %v590 = vld [vmem:[%s363 + $0x60] sm:$0xff]
        %v591 = vld [vmem:[%s363 + $0x68] sm:$0xff]
        %v592 = vld [vmem:[%s363 + $0x70] sm:$0xff]
        %v593 = vld [vmem:[%s363 + $0x78] sm:$0xff]
        %v595 = vsel %vm400, %v562, 0
        %v598 = vsel %vm400, %v563, 0
        %v601 = vsel %vm400, %v564, 0
        %v604 = vsel %vm400, %v565, 0
        %v607 = vsel %vm400, %v566, 0
        %v610 = vsel %vm400, %v567, 0
        %v613 = vsel %vm400, %v568, 0
        %v616 = vsel %vm400, %v569, 0
        %v619 = vsel %vm400, %v570, 0
        %v622 = vsel %vm400, %v571, 0
        %v625 = vsel %vm400, %v572, 0
        %v628 = vsel %vm400, %v573, 0
        %v631 = vsel %vm400, %v574, 0
        %v634 = vsel %vm400, %v575, 0
        %v637 = vsel %vm400, %v576, 0
        %v640 = vsel %vm400, %v577, 0
        %v643 = vsel %vm400, %v578, 0
        %v646 = vsel %vm400, %v579, 0
        %v649 = vsel %vm400, %v580, 0
        %v652 = vsel %vm400, %v581, 0
        %v655 = vsel %vm400, %v582, 0
        %v658 = vsel %vm400, %v583, 0
        %v661 = vsel %vm400, %v584, 0
        %v664 = vsel %vm400, %v585, 0
        %v667 = vsel %vm400, %v586, 0
        %v670 = vsel %vm400, %v587, 0
        %v673 = vsel %vm400, %v588, 0
        %v676 = vsel %vm400, %v589, 0
        %v679 = vsel %vm400, %v590, 0
        %v682 = vsel %vm400, %v591, 0
        %v685 = vsel %vm400, %v592, 0
        %v688 = vsel %vm400, %v593, 0
        %690 = vmatpush.xpose.msra.mxu0 %v688
        %691 = vmatpush.xpose.msra.mxu0 %v685
        %692 = vmatpush.xpose.msra.mxu0 %v682
        %693 = vmatpush.xpose.msra.mxu0 %v679
        %694 = vmatpush.xpose.msra.mxu0 %v676
        %695 = vmatpush.xpose.msra.mxu0 %v673
        %696 = vmatpush.xpose.msra.mxu0 %v670
        %697 = vmatpush.xpose.msra.mxu0 %v667
        %698 = vmatpush.xpose.msra.mxu0 %v664
        %699 = vmatpush.xpose.msra.mxu0 %v661
        %700 = vmatpush.xpose.msra.mxu0 %v658
        %701 = vmatpush.xpose.msra.mxu0 %v655
        %702 = vmatpush.xpose.msra.mxu0 %v652
        %703 = vmatpush.xpose.msra.mxu0 %v649
        %704 = vmatpush.xpose.msra.mxu0 %v646
        %705 = vmatpush.xpose.msra.mxu0 %v643
        %706 = vmatmul.f32.gmra.mxu0 %v595
        %v707 = vpop.f32.mrf.mxu0
        %v708 = vadd.f32 0.0, %v707
        %709 = vmatmul.f32.gmra.mxu0 %v598
        %v710 = vpop.f32.mrf.mxu0
        %v711 = vadd.f32 0.0, %v710
        %712 = vmatmul.f32.gmra.mxu0 %v601
        %v713 = vpop.f32.mrf.mxu0
        %v714 = vadd.f32 0.0, %v713
        %715 = vmatmul.f32.gmra.mxu0 %v604
        %v716 = vpop.f32.mrf.mxu0
        %v717 = vadd.f32 0.0, %v716
        %718 = vmatmul.f32.gmra.mxu0 %v607
        %v719 = vpop.f32.mrf.mxu0
        %v720 = vadd.f32 0.0, %v719
        %721 = vmatmul.f32.gmra.mxu0 %v610
        %v722 = vpop.f32.mrf.mxu0
        %v723 = vadd.f32 0.0, %v722
        %724 = vmatmul.f32.gmra.mxu0 %v613
        %v725 = vpop.f32.mrf.mxu0
        %v726 = vadd.f32 0.0, %v725
        %727 = vmatmul.f32.gmra.mxu0 %v616
        %v728 = vpop.f32.mrf.mxu0
        %v729 = vadd.f32 0.0, %v728
        %730 = vmatmul.f32.gmra.mxu0 %v619
        %v731 = vpop.f32.mrf.mxu0
        %v732 = vadd.f32 0.0, %v731
        %733 = vmatmul.f32.gmra.mxu0 %v622
        %v734 = vpop.f32.mrf.mxu0
        %v735 = vadd.f32 0.0, %v734
        %736 = vmatmul.f32.gmra.mxu0 %v625
        %v737 = vpop.f32.mrf.mxu0
        %v738 = vadd.f32 0.0, %v737
        %739 = vmatmul.f32.gmra.mxu0 %v628
        %v740 = vpop.f32.mrf.mxu0
        %v741 = vadd.f32 0.0, %v740
        %742 = vmatmul.f32.gmra.mxu0 %v631
        %v743 = vpop.f32.mrf.mxu0
        %v744 = vadd.f32 0.0, %v743
        %745 = vmatmul.f32.gmra.mxu0 %v634
        %v746 = vpop.f32.mrf.mxu0
        %v747 = vadd.f32 0.0, %v746
        %748 = vmatmul.f32.gmra.mxu0 %v637
        %v749 = vpop.f32.mrf.mxu0
        %v750 = vadd.f32 0.0, %v749
        %751 = vmatmul.f32.gmra.mxu0 %v640
        %v752 = vpop.f32.mrf.mxu0
        %v753 = vadd.f32 0.0, %v752
        %754 = vdwg.mxu0
        %v755 = vsub.f32 %v515, %v708
        %v756 = vmul.f32 %v755, %v755
        %v757 = vsub.f32 %v527, %v720
        %v758 = vmul.f32 %v757, %v757
        %v759 = vadd.f32 %v756, %v758
        %v760 = vsub.f32 %v539, %v732
        %v761 = vmul.f32 %v760, %v760
        %v762 = vadd.f32 %v759, %v761
        %v763 = vsub.f32 %v551, %v744
        %v764 = vmul.f32 %v763, %v763
        %v765 = vadd.f32 %v762, %v764
        %v766 = vsub.f32 %v518, %v711
        %v767 = vmul.f32 %v766, %v766
        %v768 = vsub.f32 %v530, %v723
        %v769 = vmul.f32 %v768, %v768
        %v770 = vadd.f32 %v767, %v769
        %v771 = vsub.f32 %v542, %v735
        %v772 = vmul.f32 %v771, %v771
        %v773 = vadd.f32 %v770, %v772
        %v774 = vsub.f32 %v554, %v747
        %v775 = vmul.f32 %v774, %v774
        %v776 = vadd.f32 %v773, %v775
        %v777 = vsub.f32 %v521, %v714
        %v778 = vmul.f32 %v777, %v777
        %v779 = vsub.f32 %v533, %v726
        %v780 = vmul.f32 %v779, %v779
        %v781 = vadd.f32 %v778, %v780
        %v782 = vsub.f32 %v545, %v738
        %v783 = vmul.f32 %v782, %v782
        %v784 = vadd.f32 %v781, %v783
        %v785 = vsub.f32 %v557, %v750
        %v786 = vmul.f32 %v785, %v785
        %v787 = vadd.f32 %v784, %v786
        %v788 = vsub.f32 %v524, %v717
        %v789 = vmul.f32 %v788, %v788
        %v790 = vsub.f32 %v536, %v729
        %v791 = vmul.f32 %v790, %v790
        %v792 = vadd.f32 %v789, %v791
        %v793 = vsub.f32 %v548, %v741
        %v794 = vmul.f32 %v793, %v793
        %v795 = vadd.f32 %v792, %v794
        %v796 = vsub.f32 %v560, %v753
        %v797 = vmul.f32 %v796, %v796
        %v798 = vadd.f32 %v795, %v797
        %v799 = vadd.f32 %v765, %v776
        %v800 = vadd.f32 %v787, %v798
        %v801 = vadd.f32 %v799, %v800
        %p802 = scmp.eq.s32.totalorder %s366, %s367
        %s803 = scalar_select %p802, 1.0, 2.0
        %v804 = vstv %s803
        %v805 = vmul.f32 %v801, %v804
        %806 = vst [vmem:[%s317] sm:$0xff] %v805
        %s807 = sand.u32 %s164, 1
        %s808 = scalar_lea.sflag [#allocation6], %s807
        %s809 = sand.u32 %s164, 1
        %s810 = smul.addr %s809, 8
        %s811 = scalar_lea.vmem [#allocation5], %s810
        // Predicated region
        $region37: #{tpu_custom_call.1} parent=35 // pred_check
          %p812 = pneg %p174
        $region38: #{tpu_custom_call.1} parent=35 // pred_check_branch
          %814 = sbr.rel (%p812) target = $region40
        $region39: #{tpu_custom_call.1} parent=35 // pred_region
          %816 = vsyncadd %s808, 0
          %s817 = sadd.s32 %s27, %s26
          %s818 = smul.addr %s817, 8
          %s819 = scalar_lea.hbm %s6, %s818
          %s821 = sshll.u32 %s811, 4
          %s822 = int_to_ptr.vmem [resolvable:$true] %s821
          %s823 = sshll.u32 %s819, 4
          %s824 = int_to_ptr.hbm [resolvable:$true] %s823
          %826 = dma.vmem_to_hbm [thread:$0]  %s822, 128, %s824, %s808
        $region40: #{tpu_custom_call.1} parent=35 // pred_fallthru
          _
      $region36: #{tpu_custom_call.1} parent=5 // pred_fallthru
        _
      %p827 = scmp.le.s32.totalorder 2, %s17
      // Predicated region
      $region41: #{tpu_custom_call.1} parent=5 // pred_check
        %p828 = pneg %p827
      $region42: #{tpu_custom_call.1} parent=5 // pred_check_branch
        %830 = sbr.rel (%p828) target = $region44
      $region43: #{tpu_custom_call.1} parent=5 // pred_region
        %s831 = ssub.s32 %s17, 2
        // Predicated region
        $region45: #{tpu_custom_call.1} parent=43 // pred_check
          %p832 = pneg %p180
        $region46: #{tpu_custom_call.1} parent=43 // pred_check_branch
          %834 = sbr.rel (%p832) target = $region48
        $region47: #{tpu_custom_call.1} parent=43 // pred_region
          %s835 = sand.u32 %s165, 1
          %s836 = scalar_lea.sflag [#allocation6], %s835
          %s837 = sand.u32 %s165, 1
          %s838 = smul.addr %s837, 8
          %s839 = scalar_lea.vmem [#allocation5], %s838
          %841 = dma.done %s836, 128
        $region48: #{tpu_custom_call.1} parent=43 // pred_fallthru
          _
      $region44: #{tpu_custom_call.1} parent=5 // pred_fallthru
        _
    $region6: #{tpu_custom_call.1} parent=1 // loop_footer
      %s21 = sadd.s32 1, %s17
    $region7: #{tpu_custom_call.1} parent=1 // loop_footer_branch
      %16 = sbr.rel target = $region3
    $region8: #{tpu_custom_call.1} parent=1 // loop_exit
      _
    %842 = vsyncpa [#allocation6], 1
    %s843 = scalar_lea.sflag [#allocation6], 1
    %844 = vsyncpa %s843, 1

</llo_original>
